<compile_context>
chip_gen: v7x
topology: tpu7x:2x2x1
jax: 0.10.0
libtpu: 0.0.40
codegen_flags: <defaults>
</compile_context>

<pallas_src>
import functools

import jax
import jax.numpy as jnp
from jax import lax
from jax.experimental import pallas as pl
from jax.experimental.pallas import tpu as pltpu


def _batch_loss_kernel(a_row_ref, a_t_ref, e_row_ref, e_t_ref, out_ref,
                       acc_s_ref, acc_t_ref, *, inv_n, precision):
    k = pl.program_id(1)

    @pl.when(k == 0)
    def _init():
        acc_s_ref[...] = jnp.zeros_like(acc_s_ref)
        acc_t_ref[...] = jnp.zeros_like(acc_t_ref)

    # Standard (tile_n, tile_k) @ (tile_k, N) contraction -> (tile_n, N), f32 acc.
    acc_s_ref[...] += jnp.dot(a_row_ref[...], a_t_ref[...],
                              precision=precision,
                              preferred_element_type=jnp.float32)
    acc_t_ref[...] += jnp.dot(e_row_ref[...], e_t_ref[...],
                              precision=precision,
                              preferred_element_type=jnp.float32)

    @pl.when(k == pl.num_programs(1) - 1)
    def _finalize():
        s = acc_s_ref[...]                                     # [tile_n, N] f32
        t = acc_t_ref[...]
        # row-wise L2 normalize: x / ||x|| == x * rsqrt(sum(x^2))   (EUP rsqrt)
        s_n = s * lax.rsqrt(jnp.sum(s * s, axis=1, keepdims=True))
        t_n = t * lax.rsqrt(jnp.sum(t * t, axis=1, keepdims=True))
        d = s_n - t_n
        out_ref[...] = (d * d * inv_n).astype(out_ref.dtype)


def _round_up(x, m):
    return ((x + m - 1) // m) * m


def _pick_tile(dim, cap, align=128):
    """Largest multiple of `align` <= cap that evenly divides `dim`."""
    t = min(cap, dim)
    t -= t % align
    while t >= align:
        if dim % t == 0:
            return t
        t -= align
    return dim


def _vmem_bytes(tile_n, tile_k, n_pad, op_bytes):
    row_blocks = 2 * 2 * tile_n * tile_k * op_bytes      # A/E row tiles, double-buffered
    all_blocks = 2 * 2 * tile_k * n_pad * op_bytes       # A^T/E^T all-rows, double-buffered
    accs = 2 * tile_n * n_pad * 4                        # persistent f32 accumulators
    out_blocks = 2 * tile_n * n_pad * 4                  # output block (double-buffered)
    return row_blocks + all_blocks + accs + out_blocks


def _choose_tiles(n_pad, d_pad, op_bytes, budget_bytes):
    cap_n = 512
    if n_pad >= 256:
        cap_n = min(cap_n, n_pad // 2)   # >=2 row tiles so both v7x cores get work
    tile_n = _pick_tile(n_pad, cap_n)
    tile_k = _pick_tile(d_pad, 1024)
    while _vmem_bytes(tile_n, tile_k, n_pad, op_bytes) > budget_bytes:
        if tile_k > 128:
            tile_k = _pick_tile(d_pad, tile_k // 2)
        elif tile_n > 128:
            tile_n = _pick_tile(n_pad, tile_n // 2)
        else:
            # TODO(synk): very large N needs a column-tiled two-pass variant (the
            # row-norm needs the full row, so the accumulator spans all N columns).
            break
    return tile_n, tile_k


def batch_loss(activations, ema_activations, batch_size, world_size=1, *,
               use_bf16=True):
    """JAX/Pallas equivalent of BatchLoss.forward. Returns an (N, N) float32 matrix."""
    assert activations.shape == ema_activations.shape
    # TODO(synk): world_size > 1 needs a cross-device all-gather (GatherLayer) before
    # the kernel; only the single-device path is implemented here.
    assert world_size == 1, "multi-device gather not implemented"
    n = batch_size * world_size
    a = activations.reshape(n, -1)
    e = ema_activations.reshape(n, -1)
    d = a.shape[1]

    op_dtype = jnp.bfloat16 if use_bf16 else jnp.float32
    op_bytes = 2 if use_bf16 else 4
    precision = None if use_bf16 else lax.Precision.HIGHEST

    # Zero-pad N and D to multiples of 128: MXU-aligned tiles, lane-dense (unmasked)
    # output stores.  Zero rows/features are numerically inert for the real rows.
    n_pad = _round_up(n, 128)
    d_pad = _round_up(d, 128)
    a_p = jnp.zeros((n_pad, d_pad), op_dtype).at[:n, :d].set(a.astype(op_dtype))
    e_p = jnp.zeros((n_pad, d_pad), op_dtype).at[:n, :d].set(e.astype(op_dtype))
    a_t = a_p.T    # (d_pad, n_pad): one XLA transpose, amortized over all K steps
    e_t = e_p.T

    budget = 40 * 1024 * 1024
    tile_n, tile_k = _choose_tiles(n_pad, d_pad, op_bytes, budget)
    grid = (n_pad // tile_n, d_pad // tile_k)

    est = _vmem_bytes(tile_n, tile_k, n_pad, op_bytes)
    vmem_limit = int(min(max(est + (8 << 20), 32 << 20), 100 << 20))

    kernel = functools.partial(_batch_loss_kernel, inv_n=1.0 / n,
                               precision=precision)
    out = pl.pallas_call(
        kernel,
        out_shape=jax.ShapeDtypeStruct((n_pad, n_pad), jnp.float32),
        grid_spec=pltpu.PrefetchScalarGridSpec(
            num_scalar_prefetch=0,
            grid=grid,
            in_specs=[
                pl.BlockSpec((tile_n, tile_k), lambda i, k: (i, k)),   # A row tile
                pl.BlockSpec((tile_k, n_pad), lambda i, k: (k, 0)),    # A^T (all rows)
                pl.BlockSpec((tile_n, tile_k), lambda i, k: (i, k)),   # E row tile
                pl.BlockSpec((tile_k, n_pad), lambda i, k: (k, 0)),    # E^T (all rows)
            ],
            out_specs=pl.BlockSpec((tile_n, n_pad), lambda i, k: (i, 0)),
            scratch_shapes=[
                pltpu.VMEM((tile_n, n_pad), jnp.float32),   # Gram accumulator (A)
                pltpu.VMEM((tile_n, n_pad), jnp.float32),   # Gram accumulator (EMA)
            ],
        ),
        compiler_params=pltpu.CompilerParams(
            dimension_semantics=("parallel", "arbitrary"),
            vmem_limit_bytes=vmem_limit,
        ),
    )(a_p, a_t, e_p, e_t)
    return out[:n, :n]


def batch_loss_ref(activations, ema_activations, batch_size, world_size=1, *,
                   operand_dtype=jnp.float32, precision=lax.Precision.HIGHEST):
    """Pure-JAX reference for validation (mirrors the PyTorch forward)."""
    n = batch_size * world_size
    a = activations.reshape(n, -1).astype(operand_dtype)
    e = ema_activations.reshape(n, -1).astype(operand_dtype)
    s = jnp.dot(a, a.T, precision=precision, preferred_element_type=jnp.float32)
    s = s / jnp.linalg.norm(s, ord=2, axis=1, keepdims=True)
    t = jnp.dot(e, e.T, precision=precision, preferred_element_type=jnp.float32)
    t = t / jnp.linalg.norm(t, ord=2, axis=1, keepdims=True)
    return (s - t) ** 2 / n


if __name__ == "__main__":
    key = jax.random.PRNGKey(0)
    k1, k2 = jax.random.split(key)

    batch_size, world_size = 8, 1
    # Small conv-style activations: (N, C, H, W) = (8, 4, 8, 8) -> flattens to (8, 256)
    shape = (batch_size * world_size, 4, 8, 8)
    activations = jax.random.normal(k1, shape, dtype=jnp.float32)
    ema_activations = jax.random.normal(k2, shape, dtype=jnp.float32)

    # Default fast path: bf16 operands (single-pass MXU), f32 accumulate.
    out_bf16 = jax.block_until_ready(
        batch_loss(activations, ema_activations, batch_size, world_size, use_bf16=True))
    ref_bf16 = batch_loss_ref(activations, ema_activations, batch_size, world_size,
                              operand_dtype=jnp.bfloat16, precision=None)
    assert out_bf16.shape == (batch_size, batch_size), out_bf16.shape
    assert jnp.allclose(out_bf16, ref_bf16, rtol=2e-3, atol=1e-6), (out_bf16, ref_bf16)

    # High-precision knob: f32 operands + Precision.HIGHEST, tight check vs reference.
    out_f32 = jax.block_until_ready(
        batch_loss(activations, ema_activations, batch_size, world_size, use_bf16=False))
    ref_f32 = batch_loss_ref(activations, ema_activations, batch_size, world_size)
    assert out_f32.shape == (batch_size, batch_size), out_f32.shape
    assert jnp.allclose(out_f32, ref_f32, rtol=1e-4, atol=1e-6), (out_f32, ref_f32)

    print("KERNEL_OK")
</pallas_src>

<mosaic_0001>
module attributes {stable_mosaic.version = 11 : i64} {
  func.func @_batch_loss_kernel(%arg0: i32, %arg1: i32, %arg2: memref<128x256xbf16, #tpu.memory_space<vmem>>, %arg3: memref<256x128xbf16, #tpu.memory_space<vmem>>, %arg4: memref<128x256xbf16, #tpu.memory_space<vmem>>, %arg5: memref<256x128xbf16, #tpu.memory_space<vmem>>, %arg6: memref<128x128xf32, #tpu.memory_space<vmem>>, %arg7: memref<128x128xf32, #tpu.memory_space<vmem>>, %arg8: memref<128x128xf32, #tpu.memory_space<vmem>>) attributes {dimension_semantics = [#tpu.dimension_semantics<parallel>, #tpu.dimension_semantics<arbitrary>], iteration_bounds = array<i64: 1, 1>, scalar_prefetch = 0 : i64, scratch_operands = 2 : i64, tpu.core_type = #tpu.core_type<tc>, window_params = [{transform_indices = @transform_0, window_bounds = array<i64: 128, 256>}, {transform_indices = @transform_1, window_bounds = array<i64: 256, 128>}, {transform_indices = @transform_2, window_bounds = array<i64: 128, 256>}, {transform_indices = @transform_3, window_bounds = array<i64: 256, 128>}, {transform_indices = @transform_4, window_bounds = array<i64: 128, 128>}]} {
    %c0_i32 = arith.constant 0 : i32
    %0 = arith.cmpi eq, %arg1, %c0_i32 : i32
    %1 = arith.extui %0 : i1 to i32
    %c0_i32_0 = arith.constant 0 : i32
    %2 = arith.cmpi ne, %1, %c0_i32_0 : i32
    scf.if %2 {
      %cst_19 = arith.constant 0.000000e+00 : f32
      %18 = vector.broadcast %cst_19 : f32 to vector<128x128xf32>
      %c0_20 = arith.constant 0 : index
      %c0_21 = arith.constant 0 : index
      %19 = vector.load %arg7[%c0_20, %c0_21] : memref<128x128xf32, #tpu.memory_space<vmem>>, vector<128x128xf32>
      tpu.vector_store %arg7[%c0_20, %c0_21], %18 {strides = array<i32>} : memref<128x128xf32, #tpu.memory_space<vmem>>, vector<128x128xf32>,
      %cst_22 = arith.constant 0.000000e+00 : f32
      %20 = vector.broadcast %cst_22 : f32 to vector<128x128xf32>
      %c0_23 = arith.constant 0 : index
      %c0_24 = arith.constant 0 : index
      %21 = vector.load %arg8[%c0_23, %c0_24] : memref<128x128xf32, #tpu.memory_space<vmem>>, vector<128x128xf32>
      tpu.vector_store %arg8[%c0_23, %c0_24], %20 {strides = array<i32>} : memref<128x128xf32, #tpu.memory_space<vmem>>, vector<128x128xf32>,
    } else {
    }
    %c0 = arith.constant 0 : index
    %c0_1 = arith.constant 0 : index
    %3 = vector.load %arg7[%c0, %c0_1] : memref<128x128xf32, #tpu.memory_space<vmem>>, vector<128x128xf32>
    %c0_2 = arith.constant 0 : index
    %c0_3 = arith.constant 0 : index
    %4 = vector.load %arg2[%c0_2, %c0_3] : memref<128x256xbf16, #tpu.memory_space<vmem>>, vector<128x256xbf16>
    %c0_4 = arith.constant 0 : index
    %c0_5 = arith.constant 0 : index
    %5 = vector.load %arg3[%c0_4, %c0_5] : memref<256x128xbf16, #tpu.memory_space<vmem>>, vector<256x128xbf16>
    %cst = arith.constant dense<0.000000e+00> : vector<128x128xf32>
    %6 = tpu.matmul %4, %5, %cst {dimension_numbers = #tpu.dot_dimension_numbers<[1], [0], [0], [1], [0, 0, 1, 1], [], []>} : vector<128x256xbf16>, vector<256x128xbf16>, vector<128x128xf32> -> vector<128x128xf32>
    %7 = arith.addf %3, %6 : vector<128x128xf32>
    %c0_6 = arith.constant 0 : index
    %c0_7 = arith.constant 0 : index
    %8 = vector.load %arg7[%c0_6, %c0_7] : memref<128x128xf32, #tpu.memory_space<vmem>>, vector<128x128xf32>
    tpu.vector_store %arg7[%c0_6, %c0_7], %7 {strides = array<i32>} : memref<128x128xf32, #tpu.memory_space<vmem>>, vector<128x128xf32>,
    %c0_8 = arith.constant 0 : index
    %c0_9 = arith.constant 0 : index
    %9 = vector.load %arg8[%c0_8, %c0_9] : memref<128x128xf32, #tpu.memory_space<vmem>>, vector<128x128xf32>
    %c0_10 = arith.constant 0 : index
    %c0_11 = arith.constant 0 : index
    %10 = vector.load %arg4[%c0_10, %c0_11] : memref<128x256xbf16, #tpu.memory_space<vmem>>, vector<128x256xbf16>
    %c0_12 = arith.constant 0 : index
    %c0_13 = arith.constant 0 : index
    %11 = vector.load %arg5[%c0_12, %c0_13] : memref<256x128xbf16, #tpu.memory_space<vmem>>, vector<256x128xbf16>
    %cst_14 = arith.constant dense<0.000000e+00> : vector<128x128xf32>
    %12 = tpu.matmul %10, %11, %cst_14 {dimension_numbers = #tpu.dot_dimension_numbers<[1], [0], [0], [1], [0, 0, 1, 1], [], []>} : vector<128x256xbf16>, vector<256x128xbf16>, vector<128x128xf32> -> vector<128x128xf32>
    %13 = arith.addf %9, %12 : vector<128x128xf32>
    %c0_15 = arith.constant 0 : index
    %c0_16 = arith.constant 0 : index
    %14 = vector.load %arg8[%c0_15, %c0_16] : memref<128x128xf32, #tpu.memory_space<vmem>>, vector<128x128xf32>
    tpu.vector_store %arg8[%c0_15, %c0_16], %13 {strides = array<i32>} : memref<128x128xf32, #tpu.memory_space<vmem>>, vector<128x128xf32>,
    %c0_i32_17 = arith.constant 0 : i32
    %15 = arith.cmpi eq, %arg1, %c0_i32_17 : i32
    %16 = arith.extui %15 : i1 to i32
    %c0_i32_18 = arith.constant 0 : i32
    %17 = arith.cmpi ne, %16, %c0_i32_18 : i32
    scf.if %17 {
      %c0_19 = arith.constant 0 : index
      %c0_20 = arith.constant 0 : index
      %18 = vector.load %arg7[%c0_19, %c0_20] : memref<128x128xf32, #tpu.memory_space<vmem>>, vector<128x128xf32>
      %c0_21 = arith.constant 0 : index
      %c0_22 = arith.constant 0 : index
      %19 = vector.load %arg8[%c0_21, %c0_22] : memref<128x128xf32, #tpu.memory_space<vmem>>, vector<128x128xf32>
      %20 = arith.mulf %18, %18 : vector<128x128xf32>
      %cst_23 = arith.constant dense<0.000000e+00> : vector<128xf32>
      %21 = vector.multi_reduction <add>, %20, %cst_23 [1] : vector<128x128xf32> to vector<128xf32>
      %22 = vector.shape_cast %21 : vector<128xf32> to vector<128x1xf32>
      %23 = math.rsqrt %22 : vector<128x1xf32>
      %24 = vector.broadcast %23 : vector<128x1xf32> to vector<128x128xf32>
      %25 = arith.mulf %18, %24 : vector<128x128xf32>
      %26 = arith.mulf %19, %19 : vector<128x128xf32>
      %cst_24 = arith.constant dense<0.000000e+00> : vector<128xf32>
      %27 = vector.multi_reduction <add>, %26, %cst_24 [1] : vector<128x128xf32> to vector<128xf32>
      %28 = vector.shape_cast %27 : vector<128xf32> to vector<128x1xf32>
      %29 = math.rsqrt %28 : vector<128x1xf32>
      %30 = vector.broadcast %29 : vector<128x1xf32> to vector<128x128xf32>
      %31 = arith.mulf %19, %30 : vector<128x128xf32>
      %32 = arith.subf %25, %31 : vector<128x128xf32>
      %33 = arith.mulf %32, %32 : vector<128x128xf32>
      %cst_25 = arith.constant 1.250000e-01 : f32
      %34 = vector.broadcast %cst_25 : f32 to vector<128x128xf32>
      %35 = arith.mulf %33, %34 : vector<128x128xf32>
      %c0_26 = arith.constant 0 : index
      %c0_27 = arith.constant 0 : index
      %36 = vector.load %arg6[%c0_26, %c0_27] : memref<128x128xf32, #tpu.memory_space<vmem>>, vector<128x128xf32>
      tpu.vector_store %arg6[%c0_26, %c0_27], %35 {strides = array<i32>} : memref<128x128xf32, #tpu.memory_space<vmem>>, vector<128x128xf32>,
    } else {
    }
    return
  }
  func.func @transform_0(%arg0: i32, %arg1: i32) -> (i32, i32) {
    %c0_i32 = arith.constant 0 : i32
    return %arg0, %arg1 : i32, i32
  }
  func.func @transform_1(%arg0: i32, %arg1: i32) -> (i32, i32) {
    %c0_i32 = arith.constant 0 : i32
    %c0_i32_0 = arith.constant 0 : i32
    return %arg1, %c0_i32 : i32, i32
  }
  func.func @transform_2(%arg0: i32, %arg1: i32) -> (i32, i32) {
    %c0_i32 = arith.constant 0 : i32
    return %arg0, %arg1 : i32, i32
  }
  func.func @transform_3(%arg0: i32, %arg1: i32) -> (i32, i32) {
    %c0_i32 = arith.constant 0 : i32
    %c0_i32_0 = arith.constant 0 : i32
    return %arg1, %c0_i32 : i32, i32
  }
  func.func @transform_4(%arg0: i32, %arg1: i32) -> (i32, i32) {
    %c0_i32 = arith.constant 0 : i32
    %c0_i32_0 = arith.constant 0 : i32
    return %arg0, %c0_i32 : i32, i32
  }
}

</mosaic_0001>

<llo_original>
// kernel: tpu_custom_call.1
$region0: #{tpu_custom_call.1}
  #allocation0 [shape = 'u32[]', space=smem, size = 0x4, offset = 0x4, fixed_abs, tag = 'smem constant byte address 0x4 - core index']
  #allocation1 [shape = 'u32[144,128]{1,0:T(1,128)}', space=vmem, size = 0x12000, scoped, tag = 'internal scratch']
  #allocation2 [shape = 'f32[128,128]{1,0:T(8,128)}', space=vmem, size = 0x10000, scoped, tag = 'scratch operand']
  #allocation3 [shape = 'f32[128,128]{1,0:T(8,128)}', space=vmem, size = 0x10000, scoped, tag = 'scratch operand']
  %s0 = inlined_call_operand.hbm [shape: bf16[128,256], index: 0, kind: input, shape index: {}]
  %s1 = inlined_call_operand.hbm [shape: bf16[256,128], index: 1, kind: input, shape index: {}]
  %s2 = inlined_call_operand.hbm [shape: bf16[128,256], index: 2, kind: input, shape index: {}]
  %s3 = inlined_call_operand.hbm [shape: bf16[256,128], index: 3, kind: input, shape index: {}]
  %s4 = inlined_call_operand.hbm [shape: f32[128,128], index: 4, kind: output, shape index: {}]
  %s5 = sld [smem:[#allocation0]]
  $region50: #{tpu_custom_call.1} parent=0
    _
  %s7 = ssub.s32 1, %s5
  %s8 = scalar_select 0, %s7, %s5
  $region1: #{tpu_custom_call.1} parent=0
    #allocation4 [shape = 'u8[65536]{0}', space=vmem, size = 0x10000, scoped, tag = 'input window, operand 0, single buffered']
    #allocation5 [shape = 's32[1]{0}', space=sflag, size = 0x4, scoped, tag = 'scoped memory for tpu_custom_call.1']
    #allocation6 [shape = 's32[1]{0}', space=sflag, size = 0x4, scoped, tag = 'scoped memory for tpu_custom_call.1']
    #allocation7 [shape = 'u8[65536]{0}', space=vmem, size = 0x10000, scoped, tag = 'input window, operand 1, single buffered']
    #allocation8 [shape = 's32[1]{0}', space=sflag, size = 0x4, scoped, tag = 'scoped memory for tpu_custom_call.1']
    #allocation9 [shape = 'u8[65536]{0}', space=vmem, size = 0x10000, scoped, tag = 'input window, operand 2, single buffered']
    #allocation10 [shape = 'u8[65536]{0}', space=vmem, size = 0x10000, scoped, tag = 'input window, operand 3, single buffered']
    #allocation11 [shape = 's32[1]{0}', space=sflag, size = 0x4, scoped, tag = 'scoped memory for tpu_custom_call.1']
    #allocation12 [shape = 'u8[65536]{0}', space=vmem, size = 0x10000, scoped, tag = 'output window, operand 0, single buffered']
    %9 = vsyncpa [#allocation5], 0
    %10 = vsyncpa [#allocation8], 0
    %11 = vsyncpa [#allocation11], 0
    %12 = vsyncpa [#allocation6], 0
    // Predicated region
    $region2: #{tpu_custom_call.1} parent=1 // pred_check
      _
    $region3: #{tpu_custom_call.1} parent=1 // pred_check_branch
      %14 = sbr.rel (0) target = $region5
    $region4: #{tpu_custom_call.1} parent=1 // pred_region
      %s16 = ssub.s32 2048, 2048
      %17 = vsyncadd [#allocation5], %s16
      %s18 = sshll.u32 [#allocation4], 4
      %s19 = int_to_ptr.vmem [resolvable:$true] %s18
      %24 = dma.hbm_to_vmem [thread:$0]  %s0, 2048, %s19, [#allocation5], 128, 128, 8
    $region5: #{tpu_custom_call.1} parent=1 // pred_fallthru
      _
    // Predicated region
    $region6: #{tpu_custom_call.1} parent=1 // pred_check
      _
    $region7: #{tpu_custom_call.1} parent=1 // pred_check_branch
      %26 = sbr.rel (0) target = $region9
    $region8: #{tpu_custom_call.1} parent=1 // pred_region
      %s28 = ssub.s32 2048, 2048
      %29 = vsyncadd [#allocation8], %s28
      %s30 = sshll.u32 [#allocation7], 4
      %s31 = int_to_ptr.vmem [resolvable:$true] %s30
      %36 = dma.hbm_to_vmem [thread:$0]  %s1, 2048, %s31, [#allocation8], 64, 64, 4
    $region9: #{tpu_custom_call.1} parent=1 // pred_fallthru
      _
    // Predicated region
    $region10: #{tpu_custom_call.1} parent=1 // pred_check
      _
    $region11: #{tpu_custom_call.1} parent=1 // pred_check_branch
      %38 = sbr.rel (0) target = $region13
    $region12: #{tpu_custom_call.1} parent=1 // pred_region
      %s40 = ssub.s32 2048, 2048
      %41 = vsyncadd [#allocation8], %s40
      %s42 = sshll.u32 [#allocation9], 4
      %s43 = int_to_ptr.vmem [resolvable:$true] %s42
      %48 = dma.hbm_to_vmem [thread:$0]  %s2, 2048, %s43, [#allocation8], 128, 128, 8
    $region13: #{tpu_custom_call.1} parent=1 // pred_fallthru
      _
    // Predicated region
    $region14: #{tpu_custom_call.1} parent=1 // pred_check
      _
    $region15: #{tpu_custom_call.1} parent=1 // pred_check_branch
      %50 = sbr.rel (0) target = $region17
    $region16: #{tpu_custom_call.1} parent=1 // pred_region
      %s52 = ssub.s32 2048, 2048
      %53 = vsyncadd [#allocation11], %s52
      %s54 = sshll.u32 [#allocation10], 4
      %s55 = int_to_ptr.vmem [resolvable:$true] %s54
      %60 = dma.hbm_to_vmem [thread:$0]  %s3, 2048, %s55, [#allocation11], 64, 64, 4
    $region17: #{tpu_custom_call.1} parent=1 // pred_fallthru
      _
    // Predicated region
    $region18: #{tpu_custom_call.1} parent=1 // pred_check
      _
    $region19: #{tpu_custom_call.1} parent=1 // pred_check_branch
      %62 = sbr.rel (0) target = $region21
    $region20: #{tpu_custom_call.1} parent=1 // pred_region
      %63 = dma.done [#allocation5], 2048
    $region21: #{tpu_custom_call.1} parent=1 // pred_fallthru
      _
    // Predicated region
    $region22: #{tpu_custom_call.1} parent=1 // pred_check
      _
    $region23: #{tpu_custom_call.1} parent=1 // pred_check_branch
      %65 = sbr.rel (0) target = $region25
    $region24: #{tpu_custom_call.1} parent=1 // pred_region
      %66 = dma.done [#allocation8], 2048
    $region25: #{tpu_custom_call.1} parent=1 // pred_fallthru
      _
    // Predicated region
    $region26: #{tpu_custom_call.1} parent=1 // pred_check
      _
    $region27: #{tpu_custom_call.1} parent=1 // pred_check_branch
      %68 = sbr.rel (0) target = $region29
    $region28: #{tpu_custom_call.1} parent=1 // pred_region
      %69 = dma.done [#allocation8], 2048
    $region29: #{tpu_custom_call.1} parent=1 // pred_fallthru
      _
    // Predicated region
    $region30: #{tpu_custom_call.1} parent=1 // pred_check
      _
    $region31: #{tpu_custom_call.1} parent=1 // pred_check_branch
      %71 = sbr.rel (0) target = $region33
    $region32: #{tpu_custom_call.1} parent=1 // pred_region
      %72 = dma.done [#allocation11], 2048
    $region33: #{tpu_custom_call.1} parent=1 // pred_fallthru
      _
    %p74 = scmp.eq.s32.totalorder 0, 0
    // Predicated region
    $region34: #{tpu_custom_call.1} parent=1 // pred_check
      %p75 = pneg %p74
    $region35: #{tpu_custom_call.1} parent=1 // pred_check_branch
      %77 = sbr.rel (%p75) target = $region37
    $region36: #{tpu_custom_call.1} parent=1 // pred_region
      %78 = vst [vmem:[#allocation2] sm:$0xff] 0.0
      %79 = vst [vmem:[#allocation2 + $0x8] sm:$0xff] 0.0
      %80 = vst [vmem:[#allocation2 + $0x10] sm:$0xff] 0.0
      %81 = vst [vmem:[#allocation2 + $0x18] sm:$0xff] 0.0
      %82 = vst [vmem:[#allocation2 + $0x20] sm:$0xff] 0.0
      %83 = vst [vmem:[#allocation2 + $0x28] sm:$0xff] 0.0
      %84 = vst [vmem:[#allocation2 + $0x30] sm:$0xff] 0.0
      %85 = vst [vmem:[#allocation2 + $0x38] sm:$0xff] 0.0
      %86 = vst [vmem:[#allocation2 + $0x40] sm:$0xff] 0.0
      %87 = vst [vmem:[#allocation2 + $0x48] sm:$0xff] 0.0
      %88 = vst [vmem:[#allocation2 + $0x50] sm:$0xff] 0.0
      %89 = vst [vmem:[#allocation2 + $0x58] sm:$0xff] 0.0
      %90 = vst [vmem:[#allocation2 + $0x60] sm:$0xff] 0.0
      %91 = vst [vmem:[#allocation2 + $0x68] sm:$0xff] 0.0
      %92 = vst [vmem:[#allocation2 + $0x70] sm:$0xff] 0.0
      %93 = vst [vmem:[#allocation2 + $0x78] sm:$0xff] 0.0
      %94 = vst [vmem:[#allocation3] sm:$0xff] 0.0
      %95 = vst [vmem:[#allocation3 + $0x8] sm:$0xff] 0.0
      %96 = vst [vmem:[#allocation3 + $0x10] sm:$0xff] 0.0
      %97 = vst [vmem:[#allocation3 + $0x18] sm:$0xff] 0.0
      %98 = vst [vmem:[#allocation3 + $0x20] sm:$0xff] 0.0
      %99 = vst [vmem:[#allocation3 + $0x28] sm:$0xff] 0.0
      %100 = vst [vmem:[#allocation3 + $0x30] sm:$0xff] 0.0
      %101 = vst [vmem:[#allocation3 + $0x38] sm:$0xff] 0.0
      %102 = vst [vmem:[#allocation3 + $0x40] sm:$0xff] 0.0
      %103 = vst [vmem:[#allocation3 + $0x48] sm:$0xff] 0.0
      %104 = vst [vmem:[#allocation3 + $0x50] sm:$0xff] 0.0
      %105 = vst [vmem:[#allocation3 + $0x58] sm:$0xff] 0.0
      %106 = vst [vmem:[#allocation3 + $0x60] sm:$0xff] 0.0
      %107 = vst [vmem:[#allocation3 + $0x68] sm:$0xff] 0.0
      %108 = vst [vmem:[#allocation3 + $0x70] sm:$0xff] 0.0
      %109 = vst [vmem:[#allocation3 + $0x78] sm:$0xff] 0.0
    $region37: #{tpu_custom_call.1} parent=1 // pred_fallthru
      _
    %v110 = vld [vmem:[#allocation2] sm:$0xff]
    %v111 = vld [vmem:[#allocation2 + $0x8] sm:$0xff]
    %v112 = vld [vmem:[#allocation2 + $0x10] sm:$0xff]
    %v113 = vld [vmem:[#allocation2 + $0x18] sm:$0xff]
    %v114 = vld [vmem:[#allocation2 + $0x20] sm:$0xff]
    %v115 = vld [vmem:[#allocation2 + $0x28] sm:$0xff]
    %v116 = vld [vmem:[#allocation2 + $0x30] sm:$0xff]
    %v117 = vld [vmem:[#allocation2 + $0x38] sm:$0xff]
    %v118 = vld [vmem:[#allocation2 + $0x40] sm:$0xff]
    %v119 = vld [vmem:[#allocation2 + $0x48] sm:$0xff]
    %v120 = vld [vmem:[#allocation2 + $0x50] sm:$0xff]
    %v121 = vld [vmem:[#allocation2 + $0x58] sm:$0xff]
    %v122 = vld [vmem:[#allocation2 + $0x60] sm:$0xff]
    %v123 = vld [vmem:[#allocation2 + $0x68] sm:$0xff]
    %v124 = vld [vmem:[#allocation2 + $0x70] sm:$0xff]
    %v125 = vld [vmem:[#allocation2 + $0x78] sm:$0xff]
    %v126 = vld [vmem:[#allocation4] sm:$0xff]
    %v127 = vld [vmem:[#allocation4 + $0x8] sm:$0xff]
    %v128 = vld [vmem:[#allocation4 + $0x10] sm:$0xff]
    %v129 = vld [vmem:[#allocation4 + $0x18] sm:$0xff]
    %v130 = vld [vmem:[#allocation4 + $0x20] sm:$0xff]
    %v131 = vld [vmem:[#allocation4 + $0x28] sm:$0xff]
    %v132 = vld [vmem:[#allocation4 + $0x30] sm:$0xff]
    %v133 = vld [vmem:[#allocation4 + $0x38] sm:$0xff]
    %v134 = vld [vmem:[#allocation4 + $0x40] sm:$0xff]
    %v135 = vld [vmem:[#allocation4 + $0x48] sm:$0xff]
    %v136 = vld [vmem:[#allocation4 + $0x50] sm:$0xff]
    %v137 = vld [vmem:[#allocation4 + $0x58] sm:$0xff]
    %v138 = vld [vmem:[#allocation4 + $0x60] sm:$0xff]
    %v139 = vld [vmem:[#allocation4 + $0x68] sm:$0xff]
    %v140 = vld [vmem:[#allocation4 + $0x70] sm:$0xff]
    %v141 = vld [vmem:[#allocation4 + $0x78] sm:$0xff]
    %v142 = vld [vmem:[#allocation7] sm:$0xf]
    %v143 = vld [vmem:[#allocation7 + $0x4] sm:$0xf]
    %v144 = vld [vmem:[#allocation7 + $0x8] sm:$0xf]
    %v145 = vld [vmem:[#allocation7 + $0xc] sm:$0xf]
    %v146 = vld [vmem:[#allocation7 + $0x10] sm:$0xf]
    %v147 = vld [vmem:[#allocation7 + $0x14] sm:$0xf]
    %v148 = vld [vmem:[#allocation7 + $0x18] sm:$0xf]
    %v149 = vld [vmem:[#allocation7 + $0x1c] sm:$0xf]
    %v150 = vld [vmem:[#allocation7 + $0x20] sm:$0xf]
    %v151 = vld [vmem:[#allocation7 + $0x24] sm:$0xf]
    %v152 = vld [vmem:[#allocation7 + $0x28] sm:$0xf]
    %v153 = vld [vmem:[#allocation7 + $0x2c] sm:$0xf]
    %v154 = vld [vmem:[#allocation7 + $0x30] sm:$0xf]
    %v155 = vld [vmem:[#allocation7 + $0x34] sm:$0xf]
    %v156 = vld [vmem:[#allocation7 + $0x38] sm:$0xf]
    %v157 = vld [vmem:[#allocation7 + $0x3c] sm:$0xf]
    %v158 = vld [vmem:[#allocation7 + $0x40] sm:$0xf]
    %v159 = vld [vmem:[#allocation7 + $0x44] sm:$0xf]
    %v160 = vld [vmem:[#allocation7 + $0x48] sm:$0xf]
    %v161 = vld [vmem:[#allocation7 + $0x4c] sm:$0xf]
    %v162 = vld [vmem:[#allocation7 + $0x50] sm:$0xf]
    %v163 = vld [vmem:[#allocation7 + $0x54] sm:$0xf]
    %v164 = vld [vmem:[#allocation7 + $0x58] sm:$0xf]
    %v165 = vld [vmem:[#allocation7 + $0x5c] sm:$0xf]
    %v166 = vld [vmem:[#allocation7 + $0x60] sm:$0xf]
    %v167 = vld [vmem:[#allocation7 + $0x64] sm:$0xf]
    %v168 = vld [vmem:[#allocation7 + $0x68] sm:$0xf]
    %v169 = vld [vmem:[#allocation7 + $0x6c] sm:$0xf]
    %v170 = vld [vmem:[#allocation7 + $0x70] sm:$0xf]
    %v171 = vld [vmem:[#allocation7 + $0x74] sm:$0xf]
    %v172 = vld [vmem:[#allocation7 + $0x78] sm:$0xf]
    %v173 = vld [vmem:[#allocation7 + $0x7c] sm:$0xf]
    %v190 = vunpack.c.l.b16 %v126
    %v191 = vunpack.c.h.b16 %v126
    %v192 = vunpack.c.l.b16 %v127
    %v193 = vunpack.c.h.b16 %v127
    %v194 = vunpack.c.l.b16 %v128
    %v195 = vunpack.c.h.b16 %v128
    %v196 = vunpack.c.l.b16 %v129
    %v197 = vunpack.c.h.b16 %v129
    %v198 = vunpack.c.l.b16 %v130
    %v199 = vunpack.c.h.b16 %v130
    %v200 = vunpack.c.l.b16 %v131
    %v201 = vunpack.c.h.b16 %v131
    %v202 = vunpack.c.l.b16 %v132
    %v203 = vunpack.c.h.b16 %v132
    %v204 = vunpack.c.l.b16 %v133
    %v205 = vunpack.c.h.b16 %v133
    %v206 = vunpack.c.l.b16 %v134
    %v207 = vunpack.c.h.b16 %v134
    %v208 = vunpack.c.l.b16 %v135
    %v209 = vunpack.c.h.b16 %v135
    %v210 = vunpack.c.l.b16 %v136
    %v211 = vunpack.c.h.b16 %v136
    %v212 = vunpack.c.l.b16 %v137
    %v213 = vunpack.c.h.b16 %v137
    %v214 = vunpack.c.l.b16 %v138
    %v215 = vunpack.c.h.b16 %v138
    %v216 = vunpack.c.l.b16 %v139
    %v217 = vunpack.c.h.b16 %v139
    %v218 = vunpack.c.l.b16 %v140
    %v219 = vunpack.c.h.b16 %v140
    %v220 = vunpack.c.l.b16 %v141
    %v221 = vunpack.c.h.b16 %v141
    %v222 = vpack.c.b16 %v192, %v190
    %v223 = vpack.c.b16 %v193, %v191
    %v224 = vpack.c.b16 %v196, %v194
    %v225 = vpack.c.b16 %v197, %v195
    %v226 = vpack.c.b16 %v200, %v198
    %v227 = vpack.c.b16 %v201, %v199
    %v228 = vpack.c.b16 %v204, %v202
    %v229 = vpack.c.b16 %v205, %v203
    %v230 = vpack.c.b16 %v208, %v206
    %v231 = vpack.c.b16 %v209, %v207
    %v232 = vpack.c.b16 %v212, %v210
    %v233 = vpack.c.b16 %v213, %v211
    %v234 = vpack.c.b16 %v216, %v214
    %v235 = vpack.c.b16 %v217, %v215
    %v236 = vpack.c.b16 %v220, %v218
    %v237 = vpack.c.b16 %v221, %v219
    %v286 = vunpack.c.l.b16 %v142
    %v287 = vunpack.c.l.b16 %v143
    %v288 = vunpack.c.l.b16 %v144
    %v289 = vunpack.c.l.b16 %v145
    %v290 = vunpack.c.l.b16 %v146
    %v291 = vunpack.c.l.b16 %v147
    %v292 = vunpack.c.l.b16 %v148
    %v293 = vunpack.c.l.b16 %v149
    %v294 = vunpack.c.l.b16 %v150
    %v295 = vunpack.c.l.b16 %v151
    %v296 = vunpack.c.l.b16 %v152
    %v297 = vunpack.c.l.b16 %v153
    %v298 = vunpack.c.l.b16 %v154
    %v299 = vunpack.c.l.b16 %v155
    %v300 = vunpack.c.l.b16 %v156
    %v301 = vunpack.c.l.b16 %v157
    %v302 = vunpack.c.l.b16 %v158
    %v303 = vunpack.c.l.b16 %v159
    %v304 = vunpack.c.l.b16 %v160
    %v305 = vunpack.c.l.b16 %v161
    %v306 = vunpack.c.l.b16 %v162
    %v307 = vunpack.c.l.b16 %v163
    %v308 = vunpack.c.l.b16 %v164
    %v309 = vunpack.c.l.b16 %v165
    %v310 = vunpack.c.l.b16 %v166
    %v311 = vunpack.c.l.b16 %v167
    %v312 = vunpack.c.l.b16 %v168
    %v313 = vunpack.c.l.b16 %v169
    %v314 = vunpack.c.l.b16 %v170
    %v315 = vunpack.c.l.b16 %v171
    %v316 = vunpack.c.l.b16 %v172
    %v317 = vunpack.c.l.b16 %v173
    %v318 = vpack.c.b16 %v287, %v286
    %v319 = vpack.c.b16 %v289, %v288
    %v320 = vpack.c.b16 %v291, %v290
    %v321 = vpack.c.b16 %v293, %v292
    %v322 = vpack.c.b16 %v295, %v294
    %v323 = vpack.c.b16 %v297, %v296
    %v324 = vpack.c.b16 %v299, %v298
    %v325 = vpack.c.b16 %v301, %v300
    %v326 = vpack.c.b16 %v303, %v302
    %v327 = vpack.c.b16 %v305, %v304
    %v328 = vpack.c.b16 %v307, %v306
    %v329 = vpack.c.b16 %v309, %v308
    %v330 = vpack.c.b16 %v311, %v310
    %v331 = vpack.c.b16 %v313, %v312
    %v332 = vpack.c.b16 %v315, %v314
    %v333 = vpack.c.b16 %v317, %v316
    %350 = vmatprep.subr.bf16.mxu0 0
    %351 = vmatpush1.bf16.msra.mxu0 %v318
    %352 = vmatprep.subr.bf16.mxu0 0
    %353 = vmatpush1.bf16.msra.mxu0 %v319
    %354 = vmatprep.subr.bf16.mxu0 0
    %355 = vmatpush1.bf16.msra.mxu0 %v320
    %356 = vmatprep.subr.bf16.mxu0 0
    %357 = vmatpush1.bf16.msra.mxu0 %v321
    %358 = vmatprep.subr.bf16.mxu0 0
    %359 = vmatpush1.bf16.msra.mxu0 %v322
    %360 = vmatprep.subr.bf16.mxu0 0
    %361 = vmatpush1.bf16.msra.mxu0 %v323
    %362 = vmatprep.subr.bf16.mxu0 0
    %363 = vmatpush1.bf16.msra.mxu0 %v324
    %364 = vmatprep.subr.bf16.mxu0 0
    %365 = vmatpush1.bf16.msra.mxu0 %v325
    %366 = vmatprep.subr.bf16.mxu0 0
    %367 = vmatpush1.bf16.msra.mxu0 %v326
    %368 = vmatprep.subr.bf16.mxu0 0
    %369 = vmatpush1.bf16.msra.mxu0 %v327
    %370 = vmatprep.subr.bf16.mxu0 0
    %371 = vmatpush1.bf16.msra.mxu0 %v328
    %372 = vmatprep.subr.bf16.mxu0 0
    %373 = vmatpush1.bf16.msra.mxu0 %v329
    %374 = vmatprep.subr.bf16.mxu0 0
    %375 = vmatpush1.bf16.msra.mxu0 %v330
    %376 = vmatprep.subr.bf16.mxu0 0
    %377 = vmatpush1.bf16.msra.mxu0 %v331
    %378 = vmatprep.subr.bf16.mxu0 0
    %379 = vmatpush1.bf16.msra.mxu0 %v332
    %380 = vmatprep.subr.bf16.mxu0 0
    %381 = vmatpush1.bf16.msra.mxu0 %v333
    %382 = vmatprep.mubr.bf16.mxu0 %v223
    %383 = vmatmul.mubr.bf16.gmra.mrb[0].mxu0 %v222
    %v384 = vpop.f32.mrb[0].mxu0
    %v385 = vadd.f32 0.0, %v384
    %v386 = vpop.f32.mrb[0].mxu0
    %v387 = vpop.f32.mrb[0].mxu0
    %v388 = vadd.f32 0.0, %v387
    %v389 = vpop.f32.mrb[0].mxu0
    %390 = vmatprep.mubr.bf16.mxu0 %v225
    %391 = vmatmul.mubr.bf16.gmra.mrb[0].mxu0 %v224
    %v392 = vpop.f32.mrb[0].mxu0
    %v393 = vadd.f32 0.0, %v392
    %v394 = vpop.f32.mrb[0].mxu0
    %v395 = vpop.f32.mrb[0].mxu0
    %v396 = vadd.f32 0.0, %v395
    %v397 = vpop.f32.mrb[0].mxu0
    %398 = vmatprep.mubr.bf16.mxu0 %v227
    %399 = vmatmul.mubr.bf16.gmra.mrb[0].mxu0 %v226
    %v400 = vpop.f32.mrb[0].mxu0
    %v401 = vadd.f32 0.0, %v400
    %v402 = vpop.f32.mrb[0].mxu0
    %v403 = vpop.f32.mrb[0].mxu0
    %v404 = vadd.f32 0.0, %v403
    %v405 = vpop.f32.mrb[0].mxu0
    %406 = vmatprep.mubr.bf16.mxu0 %v229
    %407 = vmatmul.mubr.bf16.gmra.mrb[0].mxu0 %v228
    %v408 = vpop.f32.mrb[0].mxu0
    %v409 = vadd.f32 0.0, %v408
    %v410 = vpop.f32.mrb[0].mxu0
    %v411 = vpop.f32.mrb[0].mxu0
    %v412 = vadd.f32 0.0, %v411
    %v413 = vpop.f32.mrb[0].mxu0
    %414 = vmatprep.mubr.bf16.mxu0 %v231
    %415 = vmatmul.mubr.bf16.gmra.mrb[0].mxu0 %v230
    %v416 = vpop.f32.mrb[0].mxu0
    %v417 = vadd.f32 0.0, %v416
    %v418 = vpop.f32.mrb[0].mxu0
    %v419 = vpop.f32.mrb[0].mxu0
    %v420 = vadd.f32 0.0, %v419
    %v421 = vpop.f32.mrb[0].mxu0
    %422 = vmatprep.mubr.bf16.mxu0 %v233
    %423 = vmatmul.mubr.bf16.gmra.mrb[0].mxu0 %v232
    %v424 = vpop.f32.mrb[0].mxu0
    %v425 = vadd.f32 0.0, %v424
    %v426 = vpop.f32.mrb[0].mxu0
    %v427 = vpop.f32.mrb[0].mxu0
    %v428 = vadd.f32 0.0, %v427
    %v429 = vpop.f32.mrb[0].mxu0
    %430 = vmatprep.mubr.bf16.mxu0 %v235
    %431 = vmatmul.mubr.bf16.gmra.mrb[0].mxu0 %v234
    %v432 = vpop.f32.mrb[0].mxu0
    %v433 = vadd.f32 0.0, %v432
    %v434 = vpop.f32.mrb[0].mxu0
    %v435 = vpop.f32.mrb[0].mxu0
    %v436 = vadd.f32 0.0, %v435
    %v437 = vpop.f32.mrb[0].mxu0
    %438 = vmatprep.mubr.bf16.mxu0 %v237
    %439 = vmatmul.mubr.bf16.gmra.mrb[0].mxu0 %v236
    %v440 = vpop.f32.mrb[0].mxu0
    %v441 = vadd.f32 0.0, %v440
    %v442 = vpop.f32.mrb[0].mxu0
    %v443 = vpop.f32.mrb[0].mxu0
    %v444 = vadd.f32 0.0, %v443
    %v445 = vpop.f32.mrb[0].mxu0
    %446 = vdwg.mxu0
    %v447 = vadd.f32 %v110, %v385
    %v448 = vadd.f32 %v111, %v388
    %v449 = vadd.f32 %v112, %v393
    %v450 = vadd.f32 %v113, %v396
    %v451 = vadd.f32 %v114, %v401
    %v452 = vadd.f32 %v115, %v404
    %v453 = vadd.f32 %v116, %v409
    %v454 = vadd.f32 %v117, %v412
    %v455 = vadd.f32 %v118, %v417
    %v456 = vadd.f32 %v119, %v420
    %v457 = vadd.f32 %v120, %v425
    %v458 = vadd.f32 %v121, %v428
    %v459 = vadd.f32 %v122, %v433
    %v460 = vadd.f32 %v123, %v436
    %v461 = vadd.f32 %v124, %v441
    %v462 = vadd.f32 %v125, %v444
    %463 = vst [vmem:[#allocation2] sm:$0xff] %v447
    %464 = vst [vmem:[#allocation2 + $0x8] sm:$0xff] %v448
    %465 = vst [vmem:[#allocation2 + $0x10] sm:$0xff] %v449
    %466 = vst [vmem:[#allocation2 + $0x18] sm:$0xff] %v450
    %467 = vst [vmem:[#allocation2 + $0x20] sm:$0xff] %v451
    %468 = vst [vmem:[#allocation2 + $0x28] sm:$0xff] %v452
    %469 = vst [vmem:[#allocation2 + $0x30] sm:$0xff] %v453
    %470 = vst [vmem:[#allocation2 + $0x38] sm:$0xff] %v454
    %471 = vst [vmem:[#allocation2 + $0x40] sm:$0xff] %v455
    %472 = vst [vmem:[#allocation2 + $0x48] sm:$0xff] %v456
    %473 = vst [vmem:[#allocation2 + $0x50] sm:$0xff] %v457
    %474 = vst [vmem:[#allocation2 + $0x58] sm:$0xff] %v458
    %475 = vst [vmem:[#allocation2 + $0x60] sm:$0xff] %v459
    %476 = vst [vmem:[#allocation2 + $0x68] sm:$0xff] %v460
    %477 = vst [vmem:[#allocation2 + $0x70] sm:$0xff] %v461
    %478 = vst [vmem:[#allocation2 + $0x78] sm:$0xff] %v462
    %v479 = vld [vmem:[#allocation3] sm:$0xff]
    %v480 = vld [vmem:[#allocation3 + $0x8] sm:$0xff]
    %v481 = vld [vmem:[#allocation3 + $0x10] sm:$0xff]
    %v482 = vld [vmem:[#allocation3 + $0x18] sm:$0xff]
    %v483 = vld [vmem:[#allocation3 + $0x20] sm:$0xff]
    %v484 = vld [vmem:[#allocation3 + $0x28] sm:$0xff]
    %v485 = vld [vmem:[#allocation3 + $0x30] sm:$0xff]
    %v486 = vld [vmem:[#allocation3 + $0x38] sm:$0xff]
    %v487 = vld [vmem:[#allocation3 + $0x40] sm:$0xff]
    %v488 = vld [vmem:[#allocation3 + $0x48] sm:$0xff]
    %v489 = vld [vmem:[#allocation3 + $0x50] sm:$0xff]
    %v490 = vld [vmem:[#allocation3 + $0x58] sm:$0xff]
    %v491 = vld [vmem:[#allocation3 + $0x60] sm:$0xff]
    %v492 = vld [vmem:[#allocation3 + $0x68] sm:$0xff]
    %v493 = vld [vmem:[#allocation3 + $0x70] sm:$0xff]
    %v494 = vld [vmem:[#allocation3 + $0x78] sm:$0xff]
    %v495 = vld [vmem:[#allocation9] sm:$0xff]
    %v496 = vld [vmem:[#allocation9 + $0x8] sm:$0xff]
    %v497 = vld [vmem:[#allocation9 + $0x10] sm:$0xff]
    %v498 = vld [vmem:[#allocation9 + $0x18] sm:$0xff]
    %v499 = vld [vmem:[#allocation9 + $0x20] sm:$0xff]
    %v500 = vld [vmem:[#allocation9 + $0x28] sm:$0xff]
    %v501 = vld [vmem:[#allocation9 + $0x30] sm:$0xff]
    %v502 = vld [vmem:[#allocation9 + $0x38] sm:$0xff]
    %v503 = vld [vmem:[#allocation9 + $0x40] sm:$0xff]
    %v504 = vld [vmem:[#allocation9 + $0x48] sm:$0xff]
    %v505 = vld [vmem:[#allocation9 + $0x50] sm:$0xff]
    %v506 = vld [vmem:[#allocation9 + $0x58] sm:$0xff]
    %v507 = vld [vmem:[#allocation9 + $0x60] sm:$0xff]
    %v508 = vld [vmem:[#allocation9 + $0x68] sm:$0xff]
    %v509 = vld [vmem:[#allocation9 + $0x70] sm:$0xff]
    %v510 = vld [vmem:[#allocation9 + $0x78] sm:$0xff]
    %v511 = vld [vmem:[#allocation10] sm:$0xf]
    %v512 = vld [vmem:[#allocation10 + $0x4] sm:$0xf]
    %v513 = vld [vmem:[#allocation10 + $0x8] sm:$0xf]
    %v514 = vld [vmem:[#allocation10 + $0xc] sm:$0xf]
    %v515 = vld [vmem:[#allocation10 + $0x10] sm:$0xf]
    %v516 = vld [vmem:[#allocation10 + $0x14] sm:$0xf]
    %v517 = vld [vmem:[#allocation10 + $0x18] sm:$0xf]
    %v518 = vld [vmem:[#allocation10 + $0x1c] sm:$0xf]
    %v519 = vld [vmem:[#allocation10 + $0x20] sm:$0xf]
    %v520 = vld [vmem:[#allocation10 + $0x24] sm:$0xf]
    %v521 = vld [vmem:[#allocation10 + $0x28] sm:$0xf]
    %v522 = vld [vmem:[#allocation10 + $0x2c] sm:$0xf]
    %v523 = vld [vmem:[#allocation10 + $0x30] sm:$0xf]
    %v524 = vld [vmem:[#allocation10 + $0x34] sm:$0xf]
    %v525 = vld [vmem:[#allocation10 + $0x38] sm:$0xf]
    %v526 = vld [vmem:[#allocation10 + $0x3c] sm:$0xf]
    %v527 = vld [vmem:[#allocation10 + $0x40] sm:$0xf]
    %v528 = vld [vmem:[#allocation10 + $0x44] sm:$0xf]
    %v529 = vld [vmem:[#allocation10 + $0x48] sm:$0xf]
    %v530 = vld [vmem:[#allocation10 + $0x4c] sm:$0xf]
    %v531 = vld [vmem:[#allocation10 + $0x50] sm:$0xf]
    %v532 = vld [vmem:[#allocation10 + $0x54] sm:$0xf]
    %v533 = vld [vmem:[#allocation10 + $0x58] sm:$0xf]
    %v534 = vld [vmem:[#allocation10 + $0x5c] sm:$0xf]
    %v535 = vld [vmem:[#allocation10 + $0x60] sm:$0xf]
    %v536 = vld [vmem:[#allocation10 + $0x64] sm:$0xf]
    %v537 = vld [vmem:[#allocation10 + $0x68] sm:$0xf]
    %v538 = vld [vmem:[#allocation10 + $0x6c] sm:$0xf]
    %v539 = vld [vmem:[#allocation10 + $0x70] sm:$0xf]
    %v540 = vld [vmem:[#allocation10 + $0x74] sm:$0xf]
    %v541 = vld [vmem:[#allocation10 + $0x78] sm:$0xf]
    %v542 = vld [vmem:[#allocation10 + $0x7c] sm:$0xf]
    %v559 = vunpack.c.l.b16 %v495
    %v560 = vunpack.c.h.b16 %v495
    %v561 = vunpack.c.l.b16 %v496
    %v562 = vunpack.c.h.b16 %v496
    %v563 = vunpack.c.l.b16 %v497
    %v564 = vunpack.c.h.b16 %v497
    %v565 = vunpack.c.l.b16 %v498
    %v566 = vunpack.c.h.b16 %v498
    %v567 = vunpack.c.l.b16 %v499
    %v568 = vunpack.c.h.b16 %v499
    %v569 = vunpack.c.l.b16 %v500
    %v570 = vunpack.c.h.b16 %v500
    %v571 = vunpack.c.l.b16 %v501
    %v572 = vunpack.c.h.b16 %v501
    %v573 = vunpack.c.l.b16 %v502
    %v574 = vunpack.c.h.b16 %v502
    %v575 = vunpack.c.l.b16 %v503
    %v576 = vunpack.c.h.b16 %v503
    %v577 = vunpack.c.l.b16 %v504
    %v578 = vunpack.c.h.b16 %v504
    %v579 = vunpack.c.l.b16 %v505
    %v580 = vunpack.c.h.b16 %v505
    %v581 = vunpack.c.l.b16 %v506
    %v582 = vunpack.c.h.b16 %v506
    %v583 = vunpack.c.l.b16 %v507
    %v584 = vunpack.c.h.b16 %v507
    %v585 = vunpack.c.l.b16 %v508
    %v586 = vunpack.c.h.b16 %v508
    %v587 = vunpack.c.l.b16 %v509
    %v588 = vunpack.c.h.b16 %v509
    %v589 = vunpack.c.l.b16 %v510
    %v590 = vunpack.c.h.b16 %v510
    %v591 = vpack.c.b16 %v561, %v559
    %v592 = vpack.c.b16 %v562, %v560
    %v593 = vpack.c.b16 %v565, %v563
    %v594 = vpack.c.b16 %v566, %v564
    %v595 = vpack.c.b16 %v569, %v567
    %v596 = vpack.c.b16 %v570, %v568
    %v597 = vpack.c.b16 %v573, %v571
    %v598 = vpack.c.b16 %v574, %v572
    %v599 = vpack.c.b16 %v577, %v575
    %v600 = vpack.c.b16 %v578, %v576
    %v601 = vpack.c.b16 %v581, %v579
    %v602 = vpack.c.b16 %v582, %v580
    %v603 = vpack.c.b16 %v585, %v583
    %v604 = vpack.c.b16 %v586, %v584
    %v605 = vpack.c.b16 %v589, %v587
    %v606 = vpack.c.b16 %v590, %v588
    %v655 = vunpack.c.l.b16 %v511
    %v656 = vunpack.c.l.b16 %v512
    %v657 = vunpack.c.l.b16 %v513
    %v658 = vunpack.c.l.b16 %v514
    %v659 = vunpack.c.l.b16 %v515
    %v660 = vunpack.c.l.b16 %v516
    %v661 = vunpack.c.l.b16 %v517
    %v662 = vunpack.c.l.b16 %v518
    %v663 = vunpack.c.l.b16 %v519
    %v664 = vunpack.c.l.b16 %v520
    %v665 = vunpack.c.l.b16 %v521
    %v666 = vunpack.c.l.b16 %v522
    %v667 = vunpack.c.l.b16 %v523
    %v668 = vunpack.c.l.b16 %v524
    %v669 = vunpack.c.l.b16 %v525
    %v670 = vunpack.c.l.b16 %v526
    %v671 = vunpack.c.l.b16 %v527
    %v672 = vunpack.c.l.b16 %v528
    %v673 = vunpack.c.l.b16 %v529
    %v674 = vunpack.c.l.b16 %v530
    %v675 = vunpack.c.l.b16 %v531
    %v676 = vunpack.c.l.b16 %v532
    %v677 = vunpack.c.l.b16 %v533
    %v678 = vunpack.c.l.b16 %v534
    %v679 = vunpack.c.l.b16 %v535
    %v680 = vunpack.c.l.b16 %v536
    %v681 = vunpack.c.l.b16 %v537
    %v682 = vunpack.c.l.b16 %v538
    %v683 = vunpack.c.l.b16 %v539
    %v684 = vunpack.c.l.b16 %v540
    %v685 = vunpack.c.l.b16 %v541
    %v686 = vunpack.c.l.b16 %v542
    %v687 = vpack.c.b16 %v656, %v655
    %v688 = vpack.c.b16 %v658, %v657
    %v689 = vpack.c.b16 %v660, %v659
    %v690 = vpack.c.b16 %v662, %v661
    %v691 = vpack.c.b16 %v664, %v663
    %v692 = vpack.c.b16 %v666, %v665
    %v693 = vpack.c.b16 %v668, %v667
    %v694 = vpack.c.b16 %v670, %v669
    %v695 = vpack.c.b16 %v672, %v671
    %v696 = vpack.c.b16 %v674, %v673
    %v697 = vpack.c.b16 %v676, %v675
    %v698 = vpack.c.b16 %v678, %v677
    %v699 = vpack.c.b16 %v680, %v679
    %v700 = vpack.c.b16 %v682, %v681
    %v701 = vpack.c.b16 %v684, %v683
    %v702 = vpack.c.b16 %v686, %v685
    %719 = vmatprep.subr.bf16.mxu0 0
    %720 = vmatpush1.bf16.msra.mxu0 %v687
    %721 = vmatprep.subr.bf16.mxu0 0
    %722 = vmatpush1.bf16.msra.mxu0 %v688
    %723 = vmatprep.subr.bf16.mxu0 0
    %724 = vmatpush1.bf16.msra.mxu0 %v689
    %725 = vmatprep.subr.bf16.mxu0 0
    %726 = vmatpush1.bf16.msra.mxu0 %v690
    %727 = vmatprep.subr.bf16.mxu0 0
    %728 = vmatpush1.bf16.msra.mxu0 %v691
    %729 = vmatprep.subr.bf16.mxu0 0
    %730 = vmatpush1.bf16.msra.mxu0 %v692
    %731 = vmatprep.subr.bf16.mxu0 0
    %732 = vmatpush1.bf16.msra.mxu0 %v693
    %733 = vmatprep.subr.bf16.mxu0 0
    %734 = vmatpush1.bf16.msra.mxu0 %v694
    %735 = vmatprep.subr.bf16.mxu0 0
    %736 = vmatpush1.bf16.msra.mxu0 %v695
    %737 = vmatprep.subr.bf16.mxu0 0
    %738 = vmatpush1.bf16.msra.mxu0 %v696
    %739 = vmatprep.subr.bf16.mxu0 0
    %740 = vmatpush1.bf16.msra.mxu0 %v697
    %741 = vmatprep.subr.bf16.mxu0 0
    %742 = vmatpush1.bf16.msra.mxu0 %v698
    %743 = vmatprep.subr.bf16.mxu0 0
    %744 = vmatpush1.bf16.msra.mxu0 %v699
    %745 = vmatprep.subr.bf16.mxu0 0
    %746 = vmatpush1.bf16.msra.mxu0 %v700
    %747 = vmatprep.subr.bf16.mxu0 0
    %748 = vmatpush1.bf16.msra.mxu0 %v701
    %749 = vmatprep.subr.bf16.mxu0 0
    %750 = vmatpush1.bf16.msra.mxu0 %v702
    %751 = vmatprep.mubr.bf16.mxu0 %v592
    %752 = vmatmul.mubr.bf16.gmra.mrb[0].mxu0 %v591
    %v753 = vpop.f32.mrb[0].mxu0
    %v754 = vadd.f32 0.0, %v753
    %v755 = vpop.f32.mrb[0].mxu0
    %v756 = vpop.f32.mrb[0].mxu0
    %v757 = vadd.f32 0.0, %v756
    %v758 = vpop.f32.mrb[0].mxu0
    %759 = vmatprep.mubr.bf16.mxu0 %v594
    %760 = vmatmul.mubr.bf16.gmra.mrb[0].mxu0 %v593
    %v761 = vpop.f32.mrb[0].mxu0
    %v762 = vadd.f32 0.0, %v761
    %v763 = vpop.f32.mrb[0].mxu0
    %v764 = vpop.f32.mrb[0].mxu0
    %v765 = vadd.f32 0.0, %v764
    %v766 = vpop.f32.mrb[0].mxu0
    %767 = vmatprep.mubr.bf16.mxu0 %v596
    %768 = vmatmul.mubr.bf16.gmra.mrb[0].mxu0 %v595
    %v769 = vpop.f32.mrb[0].mxu0
    %v770 = vadd.f32 0.0, %v769
    %v771 = vpop.f32.mrb[0].mxu0
    %v772 = vpop.f32.mrb[0].mxu0
    %v773 = vadd.f32 0.0, %v772
    %v774 = vpop.f32.mrb[0].mxu0
    %775 = vmatprep.mubr.bf16.mxu0 %v598
    %776 = vmatmul.mubr.bf16.gmra.mrb[0].mxu0 %v597
    %v777 = vpop.f32.mrb[0].mxu0
    %v778 = vadd.f32 0.0, %v777
    %v779 = vpop.f32.mrb[0].mxu0
    %v780 = vpop.f32.mrb[0].mxu0
    %v781 = vadd.f32 0.0, %v780
    %v782 = vpop.f32.mrb[0].mxu0
    %783 = vmatprep.mubr.bf16.mxu0 %v600
    %784 = vmatmul.mubr.bf16.gmra.mrb[0].mxu0 %v599
    %v785 = vpop.f32.mrb[0].mxu0
    %v786 = vadd.f32 0.0, %v785
    %v787 = vpop.f32.mrb[0].mxu0
    %v788 = vpop.f32.mrb[0].mxu0
    %v789 = vadd.f32 0.0, %v788
    %v790 = vpop.f32.mrb[0].mxu0
    %791 = vmatprep.mubr.bf16.mxu0 %v602
    %792 = vmatmul.mubr.bf16.gmra.mrb[0].mxu0 %v601
    %v793 = vpop.f32.mrb[0].mxu0
    %v794 = vadd.f32 0.0, %v793
    %v795 = vpop.f32.mrb[0].mxu0
    %v796 = vpop.f32.mrb[0].mxu0
    %v797 = vadd.f32 0.0, %v796
    %v798 = vpop.f32.mrb[0].mxu0
    %799 = vmatprep.mubr.bf16.mxu0 %v604
    %800 = vmatmul.mubr.bf16.gmra.mrb[0].mxu0 %v603
    %v801 = vpop.f32.mrb[0].mxu0
    %v802 = vadd.f32 0.0, %v801
    %v803 = vpop.f32.mrb[0].mxu0
    %v804 = vpop.f32.mrb[0].mxu0
    %v805 = vadd.f32 0.0, %v804
    %v806 = vpop.f32.mrb[0].mxu0
    %807 = vmatprep.mubr.bf16.mxu0 %v606
    %808 = vmatmul.mubr.bf16.gmra.mrb[0].mxu0 %v605
    %v809 = vpop.f32.mrb[0].mxu0
    %v810 = vadd.f32 0.0, %v809
    %v811 = vpop.f32.mrb[0].mxu0
    %v812 = vpop.f32.mrb[0].mxu0
    %v813 = vadd.f32 0.0, %v812
    %v814 = vpop.f32.mrb[0].mxu0
    %815 = vdwg.mxu0
    %v816 = vadd.f32 %v479, %v754
    %v817 = vadd.f32 %v480, %v757
    %v818 = vadd.f32 %v481, %v762
    %v819 = vadd.f32 %v482, %v765
    %v820 = vadd.f32 %v483, %v770
    %v821 = vadd.f32 %v484, %v773
    %v822 = vadd.f32 %v485, %v778
    %v823 = vadd.f32 %v486, %v781
    %v824 = vadd.f32 %v487, %v786
    %v825 = vadd.f32 %v488, %v789
    %v826 = vadd.f32 %v489, %v794
    %v827 = vadd.f32 %v490, %v797
    %v828 = vadd.f32 %v491, %v802
    %v829 = vadd.f32 %v492, %v805
    %v830 = vadd.f32 %v493, %v810
    %v831 = vadd.f32 %v494, %v813
    %832 = vst [vmem:[#allocation3] sm:$0xff] %v816
    %833 = vst [vmem:[#allocation3 + $0x8] sm:$0xff] %v817
    %834 = vst [vmem:[#allocation3 + $0x10] sm:$0xff] %v818
    %835 = vst [vmem:[#allocation3 + $0x18] sm:$0xff] %v819
    %836 = vst [vmem:[#allocation3 + $0x20] sm:$0xff] %v820
    %837 = vst [vmem:[#allocation3 + $0x28] sm:$0xff] %v821
    %838 = vst [vmem:[#allocation3 + $0x30] sm:$0xff] %v822
    %839 = vst [vmem:[#allocation3 + $0x38] sm:$0xff] %v823
    %840 = vst [vmem:[#allocation3 + $0x40] sm:$0xff] %v824
    %841 = vst [vmem:[#allocation3 + $0x48] sm:$0xff] %v825
    %842 = vst [vmem:[#allocation3 + $0x50] sm:$0xff] %v826
    %843 = vst [vmem:[#allocation3 + $0x58] sm:$0xff] %v827
    %844 = vst [vmem:[#allocation3 + $0x60] sm:$0xff] %v828
    %845 = vst [vmem:[#allocation3 + $0x68] sm:$0xff] %v829
    %846 = vst [vmem:[#allocation3 + $0x70] sm:$0xff] %v830
    %847 = vst [vmem:[#allocation3 + $0x78] sm:$0xff] %v831
    // Predicated region
    $region38: #{tpu_custom_call.1} parent=1 // pred_check
      %p848 = pneg %p74
    $region39: #{tpu_custom_call.1} parent=1 // pred_check_branch
      %850 = sbr.rel (%p848) target = $region41
    $region40: #{tpu_custom_call.1} parent=1 // pred_region
      %v851 = vld [vmem:[#allocation2] sm:$0xff]
      %v852 = vld [vmem:[#allocation2 + $0x8] sm:$0xff]
      %v853 = vld [vmem:[#allocation2 + $0x10] sm:$0xff]
      %v854 = vld [vmem:[#allocation2 + $0x18] sm:$0xff]
      %v855 = vld [vmem:[#allocation2 + $0x20] sm:$0xff]
      %v856 = vld [vmem:[#allocation2 + $0x28] sm:$0xff]
      %v857 = vld [vmem:[#allocation2 + $0x30] sm:$0xff]
      %v858 = vld [vmem:[#allocation2 + $0x38] sm:$0xff]
      %v859 = vld [vmem:[#allocation2 + $0x40] sm:$0xff]
      %v860 = vld [vmem:[#allocation2 + $0x48] sm:$0xff]
      %v861 = vld [vmem:[#allocation2 + $0x50] sm:$0xff]
      %v862 = vld [vmem:[#allocation2 + $0x58] sm:$0xff]
      %v863 = vld [vmem:[#allocation2 + $0x60] sm:$0xff]
      %v864 = vld [vmem:[#allocation2 + $0x68] sm:$0xff]
      %v865 = vld [vmem:[#allocation2 + $0x70] sm:$0xff]
      %v866 = vld [vmem:[#allocation2 + $0x78] sm:$0xff]
      %v867 = vld [vmem:[#allocation3] sm:$0xff]
      %v868 = vld [vmem:[#allocation3 + $0x8] sm:$0xff]
      %v869 = vld [vmem:[#allocation3 + $0x10] sm:$0xff]
      %v870 = vld [vmem:[#allocation3 + $0x18] sm:$0xff]
      %v871 = vld [vmem:[#allocation3 + $0x20] sm:$0xff]
      %v872 = vld [vmem:[#allocation3 + $0x28] sm:$0xff]
      %v873 = vld [vmem:[#allocation3 + $0x30] sm:$0xff]
      %v874 = vld [vmem:[#allocation3 + $0x38] sm:$0xff]
      %v875 = vld [vmem:[#allocation3 + $0x40] sm:$0xff]
      %v876 = vld [vmem:[#allocation3 + $0x48] sm:$0xff]
      %v877 = vld [vmem:[#allocation3 + $0x50] sm:$0xff]
      %v878 = vld [vmem:[#allocation3 + $0x58] sm:$0xff]
      %v879 = vld [vmem:[#allocation3 + $0x60] sm:$0xff]
      %v880 = vld [vmem:[#allocation3 + $0x68] sm:$0xff]
      %v881 = vld [vmem:[#allocation3 + $0x70] sm:$0xff]
      %v882 = vld [vmem:[#allocation3 + $0x78] sm:$0xff]
      %v883 = vmul.f32 %v851, %v851
      %v884 = vmul.f32 %v852, %v852
      %v885 = vmul.f32 %v853, %v853
      %v886 = vmul.f32 %v854, %v854
      %v887 = vmul.f32 %v855, %v855
      %v888 = vmul.f32 %v856, %v856
      %v889 = vmul.f32 %v857, %v857
      %v890 = vmul.f32 %v858, %v858
      %v891 = vmul.f32 %v859, %v859
      %v892 = vmul.f32 %v860, %v860
      %v893 = vmul.f32 %v861, %v861
      %v894 = vmul.f32 %v862, %v862
      %v895 = vmul.f32 %v863, %v863
      %v896 = vmul.f32 %v864, %v864
      %v897 = vmul.f32 %v865, %v865
      %v898 = vmul.f32 %v866, %v866
      %899 = vadd.xlane.f32.xlu0 %v883
      %v900 = vpop.xlane.xlu0 %899
      %901 = vadd.xlane.f32.xlu0 %v884
      %v902 = vpop.xlane.xlu0 %901
      %903 = vadd.xlane.f32.xlu0 %v885
      %v904 = vpop.xlane.xlu0 %903
      %905 = vadd.xlane.f32.xlu0 %v886
      %v906 = vpop.xlane.xlu0 %905
      %907 = vadd.xlane.f32.xlu0 %v887
      %v908 = vpop.xlane.xlu0 %907
      %909 = vadd.xlane.f32.xlu0 %v888
      %v910 = vpop.xlane.xlu0 %909
      %911 = vadd.xlane.f32.xlu0 %v889
      %v912 = vpop.xlane.xlu0 %911
      %913 = vadd.xlane.f32.xlu0 %v890
      %v914 = vpop.xlane.xlu0 %913
      %915 = vadd.xlane.f32.xlu0 %v891
      %v916 = vpop.xlane.xlu0 %915
      %917 = vadd.xlane.f32.xlu0 %v892
      %v918 = vpop.xlane.xlu0 %917
      %919 = vadd.xlane.f32.xlu0 %v893
      %v920 = vpop.xlane.xlu0 %919
      %921 = vadd.xlane.f32.xlu0 %v894
      %v922 = vpop.xlane.xlu0 %921
      %923 = vadd.xlane.f32.xlu0 %v895
      %v924 = vpop.xlane.xlu0 %923
      %925 = vadd.xlane.f32.xlu0 %v896
      %v926 = vpop.xlane.xlu0 %925
      %927 = vadd.xlane.f32.xlu0 %v897
      %v928 = vpop.xlane.xlu0 %927
      %929 = vadd.xlane.f32.xlu0 %v898
      %v930 = vpop.xlane.xlu0 %929
      %v931 = vrsqrt.pop %v900
      %v932 = vrsqrt.pop %v902
      %v933 = vrsqrt.pop %v904
      %v934 = vrsqrt.pop %v906
      %v935 = vrsqrt.pop %v908
      %v936 = vrsqrt.pop %v910
      %v937 = vrsqrt.pop %v912
      %v938 = vrsqrt.pop %v914
      %v939 = vrsqrt.pop %v916
      %v940 = vrsqrt.pop %v918
      %v941 = vrsqrt.pop %v920
      %v942 = vrsqrt.pop %v922
      %v943 = vrsqrt.pop %v924
      %v944 = vrsqrt.pop %v926
      %v945 = vrsqrt.pop %v928
      %v946 = vrsqrt.pop %v930
      %v947 = vmul.f32 %v851, %v931
      %v948 = vmul.f32 %v852, %v932
      %v949 = vmul.f32 %v853, %v933
      %v950 = vmul.f32 %v854, %v934
      %v951 = vmul.f32 %v855, %v935
      %v952 = vmul.f32 %v856, %v936
      %v953 = vmul.f32 %v857, %v937
      %v954 = vmul.f32 %v858, %v938
      %v955 = vmul.f32 %v859, %v939
      %v956 = vmul.f32 %v860, %v940
      %v957 = vmul.f32 %v861, %v941
      %v958 = vmul.f32 %v862, %v942
      %v959 = vmul.f32 %v863, %v943
      %v960 = vmul.f32 %v864, %v944
      %v961 = vmul.f32 %v865, %v945
      %v962 = vmul.f32 %v866, %v946
      %v963 = vmul.f32 %v867, %v867
      %v964 = vmul.f32 %v868, %v868
      %v965 = vmul.f32 %v869, %v869
      %v966 = vmul.f32 %v870, %v870
      %v967 = vmul.f32 %v871, %v871
      %v968 = vmul.f32 %v872, %v872
      %v969 = vmul.f32 %v873, %v873
      %v970 = vmul.f32 %v874, %v874
      %v971 = vmul.f32 %v875, %v875
      %v972 = vmul.f32 %v876, %v876
      %v973 = vmul.f32 %v877, %v877
      %v974 = vmul.f32 %v878, %v878
      %v975 = vmul.f32 %v879, %v879
      %v976 = vmul.f32 %v880, %v880
      %v977 = vmul.f32 %v881, %v881
      %v978 = vmul.f32 %v882, %v882
      %979 = vadd.xlane.f32.xlu0 %v963
      %v980 = vpop.xlane.xlu0 %979
      %981 = vadd.xlane.f32.xlu0 %v964
      %v982 = vpop.xlane.xlu0 %981
      %983 = vadd.xlane.f32.xlu0 %v965
      %v984 = vpop.xlane.xlu0 %983
      %985 = vadd.xlane.f32.xlu0 %v966
      %v986 = vpop.xlane.xlu0 %985
      %987 = vadd.xlane.f32.xlu0 %v967
      %v988 = vpop.xlane.xlu0 %987
      %989 = vadd.xlane.f32.xlu0 %v968
      %v990 = vpop.xlane.xlu0 %989
      %991 = vadd.xlane.f32.xlu0 %v969
      %v992 = vpop.xlane.xlu0 %991
      %993 = vadd.xlane.f32.xlu0 %v970
      %v994 = vpop.xlane.xlu0 %993
      %995 = vadd.xlane.f32.xlu0 %v971
      %v996 = vpop.xlane.xlu0 %995
      %997 = vadd.xlane.f32.xlu0 %v972
      %v998 = vpop.xlane.xlu0 %997
      %999 = vadd.xlane.f32.xlu0 %v973
      %v1000 = vpop.xlane.xlu0 %999
      %1001 = vadd.xlane.f32.xlu0 %v974
      %v1002 = vpop.xlane.xlu0 %1001
      %1003 = vadd.xlane.f32.xlu0 %v975
      %v1004 = vpop.xlane.xlu0 %1003
      %1005 = vadd.xlane.f32.xlu0 %v976
      %v1006 = vpop.xlane.xlu0 %1005
      %1007 = vadd.xlane.f32.xlu0 %v977
      %v1008 = vpop.xlane.xlu0 %1007
      %1009 = vadd.xlane.f32.xlu0 %v978
      %v1010 = vpop.xlane.xlu0 %1009
      %v1011 = vrsqrt.pop %v980
      %v1012 = vrsqrt.pop %v982
      %v1013 = vrsqrt.pop %v984
      %v1014 = vrsqrt.pop %v986
      %v1015 = vrsqrt.pop %v988
      %v1016 = vrsqrt.pop %v990
      %v1017 = vrsqrt.pop %v992
      %v1018 = vrsqrt.pop %v994
      %v1019 = vrsqrt.pop %v996
      %v1020 = vrsqrt.pop %v998
      %v1021 = vrsqrt.pop %v1000
      %v1022 = vrsqrt.pop %v1002
      %v1023 = vrsqrt.pop %v1004
      %v1024 = vrsqrt.pop %v1006
      %v1025 = vrsqrt.pop %v1008
      %v1026 = vrsqrt.pop %v1010
      %v1027 = vmul.f32 %v867, %v1011
      %v1028 = vmul.f32 %v868, %v1012
      %v1029 = vmul.f32 %v869, %v1013
      %v1030 = vmul.f32 %v870, %v1014
      %v1031 = vmul.f32 %v871, %v1015
      %v1032 = vmul.f32 %v872, %v1016
      %v1033 = vmul.f32 %v873, %v1017
      %v1034 = vmul.f32 %v874, %v1018
      %v1035 = vmul.f32 %v875, %v1019
      %v1036 = vmul.f32 %v876, %v1020
      %v1037 = vmul.f32 %v877, %v1021
      %v1038 = vmul.f32 %v878, %v1022
      %v1039 = vmul.f32 %v879, %v1023
      %v1040 = vmul.f32 %v880, %v1024
      %v1041 = vmul.f32 %v881, %v1025
      %v1042 = vmul.f32 %v882, %v1026
      %v1043 = vsub.f32 %v947, %v1027
      %v1044 = vsub.f32 %v948, %v1028
      %v1045 = vsub.f32 %v949, %v1029
      %v1046 = vsub.f32 %v950, %v1030
      %v1047 = vsub.f32 %v951, %v1031
      %v1048 = vsub.f32 %v952, %v1032
      %v1049 = vsub.f32 %v953, %v1033
      %v1050 = vsub.f32 %v954, %v1034
      %v1051 = vsub.f32 %v955, %v1035
      %v1052 = vsub.f32 %v956, %v1036
      %v1053 = vsub.f32 %v957, %v1037
      %v1054 = vsub.f32 %v958, %v1038
      %v1055 = vsub.f32 %v959, %v1039
      %v1056 = vsub.f32 %v960, %v1040
      %v1057 = vsub.f32 %v961, %v1041
      %v1058 = vsub.f32 %v962, %v1042
      %v1059 = vmul.f32 %v1043, %v1043
      %v1060 = vmul.f32 %v1044, %v1044
      %v1061 = vmul.f32 %v1045, %v1045
      %v1062 = vmul.f32 %v1046, %v1046
      %v1063 = vmul.f32 %v1047, %v1047
      %v1064 = vmul.f32 %v1048, %v1048
      %v1065 = vmul.f32 %v1049, %v1049
      %v1066 = vmul.f32 %v1050, %v1050
      %v1067 = vmul.f32 %v1051, %v1051
      %v1068 = vmul.f32 %v1052, %v1052
      %v1069 = vmul.f32 %v1053, %v1053
      %v1070 = vmul.f32 %v1054, %v1054
      %v1071 = vmul.f32 %v1055, %v1055
      %v1072 = vmul.f32 %v1056, %v1056
      %v1073 = vmul.f32 %v1057, %v1057
      %v1074 = vmul.f32 %v1058, %v1058
      %v1075 = vmul.f32 %v1059, 0.125
      %v1076 = vmul.f32 %v1060, 0.125
      %v1077 = vmul.f32 %v1061, 0.125
      %v1078 = vmul.f32 %v1062, 0.125
      %v1079 = vmul.f32 %v1063, 0.125
      %v1080 = vmul.f32 %v1064, 0.125
      %v1081 = vmul.f32 %v1065, 0.125
      %v1082 = vmul.f32 %v1066, 0.125
      %v1083 = vmul.f32 %v1067, 0.125
      %v1084 = vmul.f32 %v1068, 0.125
      %v1085 = vmul.f32 %v1069, 0.125
      %v1086 = vmul.f32 %v1070, 0.125
      %v1087 = vmul.f32 %v1071, 0.125
      %v1088 = vmul.f32 %v1072, 0.125
      %v1089 = vmul.f32 %v1073, 0.125
      %v1090 = vmul.f32 %v1074, 0.125
      %1091 = vst [vmem:[#allocation12] sm:$0xff] %v1075
      %1092 = vst [vmem:[#allocation12 + $0x8] sm:$0xff] %v1076
      %1093 = vst [vmem:[#allocation12 + $0x10] sm:$0xff] %v1077
      %1094 = vst [vmem:[#allocation12 + $0x18] sm:$0xff] %v1078
      %1095 = vst [vmem:[#allocation12 + $0x20] sm:$0xff] %v1079
      %1096 = vst [vmem:[#allocation12 + $0x28] sm:$0xff] %v1080
      %1097 = vst [vmem:[#allocation12 + $0x30] sm:$0xff] %v1081
      %1098 = vst [vmem:[#allocation12 + $0x38] sm:$0xff] %v1082
      %1099 = vst [vmem:[#allocation12 + $0x40] sm:$0xff] %v1083
      %1100 = vst [vmem:[#allocation12 + $0x48] sm:$0xff] %v1084
      %1101 = vst [vmem:[#allocation12 + $0x50] sm:$0xff] %v1085
      %1102 = vst [vmem:[#allocation12 + $0x58] sm:$0xff] %v1086
      %1103 = vst [vmem:[#allocation12 + $0x60] sm:$0xff] %v1087
      %1104 = vst [vmem:[#allocation12 + $0x68] sm:$0xff] %v1088
      %1105 = vst [vmem:[#allocation12 + $0x70] sm:$0xff] %v1089
      %1106 = vst [vmem:[#allocation12 + $0x78] sm:$0xff] %v1090
    $region41: #{tpu_custom_call.1} parent=1 // pred_fallthru
      _
    // Predicated region
    $region42: #{tpu_custom_call.1} parent=1 // pred_check
      _
    $region43: #{tpu_custom_call.1} parent=1 // pred_check_branch
      %1108 = sbr.rel (0) target = $region45
    $region44: #{tpu_custom_call.1} parent=1 // pred_region
      %s1110 = ssub.s32 2048, 2048
      %1111 = vsyncadd [#allocation6], %s1110
      %s1112 = sshll.u32 [#allocation12], 4
      %s1113 = int_to_ptr.vmem [resolvable:$true] %s1112
      %1118 = dma.vmem_to_hbm [thread:$0]  %s1113, 2048, %s4, [#allocation6], 128, 128, 8
    $region45: #{tpu_custom_call.1} parent=1 // pred_fallthru
      _
    // Predicated region
    $region46: #{tpu_custom_call.1} parent=1 // pred_check
      _
    $region47: #{tpu_custom_call.1} parent=1 // pred_check_branch
      %1120 = sbr.rel (0) target = $region49
    $region48: #{tpu_custom_call.1} parent=1 // pred_region
      %1121 = dma.done [#allocation6], 2048
    $region49: #{tpu_custom_call.1} parent=1 // pred_fallthru
      _
    %1122 = vsyncpa [#allocation5], 1
    %1123 = vsyncpa [#allocation8], 1
    %1124 = vsyncpa [#allocation11], 1
    %1125 = vsyncpa [#allocation6], 1

</llo_original>
